<compile_context>
chip_gen: v5e
topology: v5e:2x2
jax: 0.10.0
libtpu: 0.0.40
codegen_flags: <defaults>
</compile_context>

<pallas_src>
import functools

import jax
import jax.numpy as jnp
from jax import lax
from jax.experimental import pallas as pl
from jax.experimental.pallas import tpu as pltpu


def mlp_kernel(x_ref, w1_ref, w2_ref, w3_ref, o_ref):
    # x_ref:  (bm, Dp)   w1_ref: (Dp, Hp)   w2_ref: (Hp, Hp)   w3_ref: (Hp, Op)
    x = x_ref[...]
    h1 = jnp.dot(x, w1_ref[...], preferred_element_type=jnp.float32)
    h1 = jnp.maximum(h1, 0.0)                       # F.relu
    h2 = jnp.dot(h1, w2_ref[...], preferred_element_type=jnp.float32)
    h2 = jnp.maximum(h2, 0.0)                       # F.relu
    out = jnp.dot(h2, w3_ref[...], preferred_element_type=jnp.float32)
    o_ref[...] = out.astype(o_ref.dtype)


def _round_up(n, m):
    return ((n + m - 1) // m) * m


@functools.partial(jax.jit, static_argnames=("bm",))
def mlp_forward(x, w1, w2, w3, *, bm=512):
    """Fused MLP forward.

    x:  [B, 784] float32
    w1: [H, 784], w2: [H, H], w3: [O, H]   (PyTorch Linear [out, in] convention)
    returns [B, O] float32
    """
    LANE = 128   # vreg lane width
    SUB = 8      # vreg sublane width

    B, D_in = x.shape
    H = w1.shape[0]
    O = w3.shape[0]

    # Lane-pad every contraction / output dim to a multiple of 128.
    D_pad = _round_up(D_in, LANE)   # 784 -> 896
    H_pad = _round_up(H, LANE)      # e.g. 100 -> 128
    O_pad = _round_up(O, LANE)      # 10  -> 128

    # Batch tile: big by default, shrink for tiny batches, always multiple of 8.
    bm = max(SUB, _round_up(bm, SUB))
    bm_eff = min(bm, _round_up(B, SUB))
    B_pad = _round_up(B, bm_eff)

    f32 = jnp.float32
    x = x.astype(f32)

    # Zero-pad and pre-transpose weights to [in, out] so the kernel computes
    # plain x @ W1 @ W2 @ W3 (matching y = x @ W.T of nn.Linear).
    w1_t = jnp.zeros((D_pad, H_pad), f32).at[:D_in, :H].set(w1.astype(f32).T)
    w2_t = jnp.zeros((H_pad, H_pad), f32).at[:H, :H].set(w2.astype(f32).T)
    w3_t = jnp.zeros((H_pad, O_pad), f32).at[:H, :O].set(w3.astype(f32).T)

    # Pad x only if needed (skip the copy entirely when already aligned).
    if (B_pad, D_pad) != (B, D_in):
        x_p = jnp.pad(x, ((0, B_pad - B), (0, D_pad - D_in)))
    else:
        x_p = x

    grid = (B_pad // bm_eff,)

    flops = 2 * B_pad * (D_pad * H_pad + H_pad * H_pad + H_pad * O_pad)
    bytes_accessed = 4 * (
        B_pad * D_pad                                    # stream x
        + D_pad * H_pad + H_pad * H_pad + H_pad * O_pad  # resident weights
        + B_pad * O_pad                                  # output writeback
    )

    out_padded = pl.pallas_call(
        mlp_kernel,
        out_shape=jax.ShapeDtypeStruct((B_pad, O_pad), f32),
        grid_spec=pltpu.PrefetchScalarGridSpec(
            num_scalar_prefetch=0,
            grid=grid,
            in_specs=[
                pl.BlockSpec((bm_eff, D_pad), lambda i: (i, 0)),  # x tile (streamed)
                pl.BlockSpec((D_pad, H_pad), lambda i: (0, 0)),   # W1.T (resident)
                pl.BlockSpec((H_pad, H_pad), lambda i: (0, 0)),   # W2.T (resident)
                pl.BlockSpec((H_pad, O_pad), lambda i: (0, 0)),   # W3.T (resident)
            ],
            out_specs=pl.BlockSpec((bm_eff, O_pad), lambda i: (i, 0)),  # lane-dense
        ),
        compiler_params=pltpu.CompilerParams(
            dimension_semantics=("parallel",),   # batch axis -> both TCs on v7x
        ),
        cost_estimate=pl.CostEstimate(
            flops=flops, transcendentals=0, bytes_accessed=bytes_accessed
        ),
    )(x_p, w1_t, w2_t, w3_t)

    # Slice padded batch rows / padded output lanes back off.
    return out_padded[:B, :O]


def init_params(key, n_hidden=100, n_outputs=10, d_in=784):
    """Deterministic Kaiming-uniform-ish init (nn.Linear [out, in] shapes)."""
    k1, k2, k3 = jax.random.split(key, 3)

    def lin_w(k, fan_out, fan_in):
        bound = 1.0 / jnp.sqrt(fan_in)
        return jax.random.uniform(k, (fan_out, fan_in), jnp.float32, -bound, bound)

    w1 = lin_w(k1, n_hidden, d_in)       # lin1.weight  [H, 784]
    w2 = lin_w(k2, n_hidden, n_hidden)   # lin2.weight  [H, H]
    w3 = lin_w(k3, n_outputs, n_hidden)  # fc1.weight   [O, H]
    return w1, w2, w3


def reference_forward(x, w1, w2, w3):
    # Pure-JAX reference replicating the PyTorch forward (default space=None path).
    hp = lax.Precision.HIGHEST
    h1 = jnp.maximum(jnp.dot(x, w1.T, precision=hp), 0.0)
    h2 = jnp.maximum(jnp.dot(h1, w2.T, precision=hp), 0.0)
    return jnp.dot(h2, w3.T, precision=hp)


if __name__ == "__main__":
    key = jax.random.PRNGKey(0)
    kx, kp = jax.random.split(key)

    B, D_IN, H, O = 64, 784, 100, 10   # module defaults: 784 -> 100 -> 100 -> 10
    x = jax.random.normal(kx, (B, D_IN), jnp.float32)
    w1, w2, w3 = init_params(kp, n_hidden=H, n_outputs=O, d_in=D_IN)

    out = mlp_forward(x, w1, w2, w3, bm=512)
    out = jax.block_until_ready(out)

    ref = reference_forward(x, w1, w2, w3)
    assert out.shape == (B, O)
    assert jnp.allclose(out, ref, atol=1e-3, rtol=1e-3), "mismatch vs reference"

    print("KERNEL_OK")
</pallas_src>

<mosaic_0001>
module attributes {stable_mosaic.version = 11 : i64} {
  func.func @mlp_kernel(%arg0: i32, %arg1: memref<64x896xf32, #tpu.memory_space<vmem>>, %arg2: memref<896x128xf32, #tpu.memory_space<vmem>>, %arg3: memref<128x128xf32, #tpu.memory_space<vmem>>, %arg4: memref<128x128xf32, #tpu.memory_space<vmem>>, %arg5: memref<64x128xf32, #tpu.memory_space<vmem>>) attributes {dimension_semantics = [#tpu.dimension_semantics<parallel>], iteration_bounds = array<i64: 1>, scalar_prefetch = 0 : i64, scratch_operands = 0 : i64, tpu.core_type = #tpu.core_type<tc>, window_params = [{transform_indices = @transform_0, window_bounds = array<i64: 64, 896>}, {pipeline_mode = #tpu.pipeline_mode<synchronous>, transform_indices = @transform_1, window_bounds = array<i64: 896, 128>}, {pipeline_mode = #tpu.pipeline_mode<synchronous>, transform_indices = @transform_2, window_bounds = array<i64: 128, 128>}, {pipeline_mode = #tpu.pipeline_mode<synchronous>, transform_indices = @transform_3, window_bounds = array<i64: 128, 128>}, {transform_indices = @transform_4, window_bounds = array<i64: 64, 128>}]} {
    %c0 = arith.constant 0 : index
    %c0_0 = arith.constant 0 : index
    %0 = vector.load %arg1[%c0, %c0_0] : memref<64x896xf32, #tpu.memory_space<vmem>>, vector<64x896xf32>
    %c0_1 = arith.constant 0 : index
    %c0_2 = arith.constant 0 : index
    %1 = vector.load %arg2[%c0_1, %c0_2] : memref<896x128xf32, #tpu.memory_space<vmem>>, vector<896x128xf32>
    %cst = arith.constant dense<0.000000e+00> : vector<64x128xf32>
    %2 = tpu.matmul %0, %1, %cst {dimension_numbers = #tpu.dot_dimension_numbers<[1], [0], [0], [1], [0, 0, 1, 1], [], []>} : vector<64x896xf32>, vector<896x128xf32>, vector<64x128xf32> -> vector<64x128xf32>
    %cst_3 = arith.constant 0.000000e+00 : f32
    %3 = vector.broadcast %cst_3 : f32 to vector<64x128xf32>
    %4 = arith.maximumf %2, %3 : vector<64x128xf32>
    %c0_4 = arith.constant 0 : index
    %c0_5 = arith.constant 0 : index
    %5 = vector.load %arg3[%c0_4, %c0_5] : memref<128x128xf32, #tpu.memory_space<vmem>>, vector<128x128xf32>
    %cst_6 = arith.constant dense<0.000000e+00> : vector<64x128xf32>
    %6 = tpu.matmul %4, %5, %cst_6 {dimension_numbers = #tpu.dot_dimension_numbers<[1], [0], [0], [1], [0, 0, 1, 1], [], []>} : vector<64x128xf32>, vector<128x128xf32>, vector<64x128xf32> -> vector<64x128xf32>
    %cst_7 = arith.constant 0.000000e+00 : f32
    %7 = vector.broadcast %cst_7 : f32 to vector<64x128xf32>
    %8 = arith.maximumf %6, %7 : vector<64x128xf32>
    %c0_8 = arith.constant 0 : index
    %c0_9 = arith.constant 0 : index
    %9 = vector.load %arg4[%c0_8, %c0_9] : memref<128x128xf32, #tpu.memory_space<vmem>>, vector<128x128xf32>
    %cst_10 = arith.constant dense<0.000000e+00> : vector<64x128xf32>
    %10 = tpu.matmul %8, %9, %cst_10 {dimension_numbers = #tpu.dot_dimension_numbers<[1], [0], [0], [1], [0, 0, 1, 1], [], []>} : vector<64x128xf32>, vector<128x128xf32>, vector<64x128xf32> -> vector<64x128xf32>
    %c0_11 = arith.constant 0 : index
    %c0_12 = arith.constant 0 : index
    %11 = vector.load %arg5[%c0_11, %c0_12] : memref<64x128xf32, #tpu.memory_space<vmem>>, vector<64x128xf32>
    tpu.vector_store %arg5[%c0_11, %c0_12], %10 {strides = array<i32>} : memref<64x128xf32, #tpu.memory_space<vmem>>, vector<64x128xf32>,
    return
  }
  func.func @transform_0(%arg0: i32) -> (i32, i32) {
    %c0_i32 = arith.constant 0 : i32
    %c0_i32_0 = arith.constant 0 : i32
    return %arg0, %c0_i32 : i32, i32
  }
  func.func @transform_1(%arg0: i32) -> (i32, i32) {
    %c0_i32 = arith.constant 0 : i32
    %c0_i32_0 = arith.constant 0 : i32
    %c0_i32_1 = arith.constant 0 : i32
    return %c0_i32, %c0_i32_0 : i32, i32
  }
  func.func @transform_2(%arg0: i32) -> (i32, i32) {
    %c0_i32 = arith.constant 0 : i32
    %c0_i32_0 = arith.constant 0 : i32
    %c0_i32_1 = arith.constant 0 : i32
    return %c0_i32, %c0_i32_0 : i32, i32
  }
  func.func @transform_3(%arg0: i32) -> (i32, i32) {
    %c0_i32 = arith.constant 0 : i32
    %c0_i32_0 = arith.constant 0 : i32
    %c0_i32_1 = arith.constant 0 : i32
    return %c0_i32, %c0_i32_0 : i32, i32
  }
  func.func @transform_4(%arg0: i32) -> (i32, i32) {
    %c0_i32 = arith.constant 0 : i32
    %c0_i32_0 = arith.constant 0 : i32
    return %arg0, %c0_i32 : i32, i32
  }
}

</mosaic_0001>

<llo_original>
// kernel: mlp_forward.1
$region0: #{mlp_forward.1}
  #allocation0 [shape = 'u32[]', space=smem, size = 0x4, offset = 0x4, fixed_abs, tag = 'smem constant byte address 0x4 - core index']
  #allocation1 [shape = 'u32[72,128]{1,0:T(1,128)}', space=vmem, size = 0x9000, scoped, tag = 'internal scratch']
  %s0 = inlined_call_operand.vmem [shape: f32[64,896], index: 0, kind: input, shape index: {}]
  %s1 = inlined_call_operand.vmem [shape: f32[896,128], index: 1, kind: input, shape index: {}]
  %s2 = inlined_call_operand.vmem [shape: f32[128,128], index: 2, kind: input, shape index: {}]
  %s3 = inlined_call_operand.vmem [shape: f32[128,128], index: 3, kind: input, shape index: {}]
  %s4 = inlined_call_operand.vmem [shape: f32[64,128], index: 4, kind: output, shape index: {}]
  %s5 = sld [smem:[#allocation0]]
  $region26: #{mlp_forward.1} parent=0
    _
  %s7 = ssub.s32 1, %s5
  %s8 = scalar_select 0, %s7, %s5
  // Predicated region
  $region2: #{mlp_forward.1} parent=0 // pred_check
    _
  $region3: #{mlp_forward.1} parent=0 // pred_check_branch
    %10 = sbr.rel (0) target = $region5
  $region4: #{mlp_forward.1} parent=0 // pred_region
    _
  $region5: #{mlp_forward.1} parent=0 // pred_fallthru
    _
  // Predicated region
  $region6: #{mlp_forward.1} parent=0 // pred_check
    _
  $region7: #{mlp_forward.1} parent=0 // pred_check_branch
    %12 = sbr.rel (0) target = $region9
  $region8: #{mlp_forward.1} parent=0 // pred_region
    _
  $region9: #{mlp_forward.1} parent=0 // pred_fallthru
    _
  // Predicated region
  $region10: #{mlp_forward.1} parent=0 // pred_check
    _
  $region11: #{mlp_forward.1} parent=0 // pred_check_branch
    %14 = sbr.rel (0) target = $region13
  $region12: #{mlp_forward.1} parent=0 // pred_region
    _
  $region13: #{mlp_forward.1} parent=0 // pred_fallthru
    _
  // Predicated region
  $region14: #{mlp_forward.1} parent=0 // pred_check
    _
  $region15: #{mlp_forward.1} parent=0 // pred_check_branch
    %16 = sbr.rel (0) target = $region17
  $region16: #{mlp_forward.1} parent=0 // pred_region
    _
  $region17: #{mlp_forward.1} parent=0 // pred_fallthru
    _
  %v17 = vld [vmem:[%s0] sm:$0xff]
  %v18 = vld [vmem:[%s0 + $0x8] sm:$0xff]
  %v19 = vld [vmem:[%s0 + $0x10] sm:$0xff]
  %v20 = vld [vmem:[%s0 + $0x18] sm:$0xff]
  %v21 = vld [vmem:[%s0 + $0x20] sm:$0xff]
  %v22 = vld [vmem:[%s0 + $0x28] sm:$0xff]
  %v23 = vld [vmem:[%s0 + $0x30] sm:$0xff]
  %v24 = vld [vmem:[%s0 + $0x38] sm:$0xff]
  %v25 = vld [vmem:[%s0 + $0x40] sm:$0xff]
  %v26 = vld [vmem:[%s0 + $0x48] sm:$0xff]
  %v27 = vld [vmem:[%s0 + $0x50] sm:$0xff]
  %v28 = vld [vmem:[%s0 + $0x58] sm:$0xff]
  %v29 = vld [vmem:[%s0 + $0x60] sm:$0xff]
  %v30 = vld [vmem:[%s0 + $0x68] sm:$0xff]
  %v31 = vld [vmem:[%s0 + $0x70] sm:$0xff]
  %v32 = vld [vmem:[%s0 + $0x78] sm:$0xff]
  %v33 = vld [vmem:[%s0 + $0x80] sm:$0xff]
  %v34 = vld [vmem:[%s0 + $0x88] sm:$0xff]
  %v35 = vld [vmem:[%s0 + $0x90] sm:$0xff]
  %v36 = vld [vmem:[%s0 + $0x98] sm:$0xff]
  %v37 = vld [vmem:[%s0 + $0xa0] sm:$0xff]
  %v38 = vld [vmem:[%s0 + $0xa8] sm:$0xff]
  %v39 = vld [vmem:[%s0 + $0xb0] sm:$0xff]
  %v40 = vld [vmem:[%s0 + $0xb8] sm:$0xff]
  %v41 = vld [vmem:[%s0 + $0xc0] sm:$0xff]
  %v42 = vld [vmem:[%s0 + $0xc8] sm:$0xff]
  %v43 = vld [vmem:[%s0 + $0xd0] sm:$0xff]
  %v44 = vld [vmem:[%s0 + $0xd8] sm:$0xff]
  %v45 = vld [vmem:[%s0 + $0xe0] sm:$0xff]
  %v46 = vld [vmem:[%s0 + $0xe8] sm:$0xff]
  %v47 = vld [vmem:[%s0 + $0xf0] sm:$0xff]
  %v48 = vld [vmem:[%s0 + $0xf8] sm:$0xff]
  %v49 = vld [vmem:[%s0 + $0x100] sm:$0xff]
  %v50 = vld [vmem:[%s0 + $0x108] sm:$0xff]
  %v51 = vld [vmem:[%s0 + $0x110] sm:$0xff]
  %v52 = vld [vmem:[%s0 + $0x118] sm:$0xff]
  %v53 = vld [vmem:[%s0 + $0x120] sm:$0xff]
  %v54 = vld [vmem:[%s0 + $0x128] sm:$0xff]
  %v55 = vld [vmem:[%s0 + $0x130] sm:$0xff]
  %v56 = vld [vmem:[%s0 + $0x138] sm:$0xff]
  %v57 = vld [vmem:[%s0 + $0x140] sm:$0xff]
  %v58 = vld [vmem:[%s0 + $0x148] sm:$0xff]
  %v59 = vld [vmem:[%s0 + $0x150] sm:$0xff]
  %v60 = vld [vmem:[%s0 + $0x158] sm:$0xff]
  %v61 = vld [vmem:[%s0 + $0x160] sm:$0xff]
  %v62 = vld [vmem:[%s0 + $0x168] sm:$0xff]
  %v63 = vld [vmem:[%s0 + $0x170] sm:$0xff]
  %v64 = vld [vmem:[%s0 + $0x178] sm:$0xff]
  %v65 = vld [vmem:[%s0 + $0x180] sm:$0xff]
  %v66 = vld [vmem:[%s0 + $0x188] sm:$0xff]
  %v67 = vld [vmem:[%s0 + $0x190] sm:$0xff]
  %v68 = vld [vmem:[%s0 + $0x198] sm:$0xff]
  %v69 = vld [vmem:[%s0 + $0x1a0] sm:$0xff]
  %v70 = vld [vmem:[%s0 + $0x1a8] sm:$0xff]
  %v71 = vld [vmem:[%s0 + $0x1b0] sm:$0xff]
  %v72 = vld [vmem:[%s0 + $0x1b8] sm:$0xff]
  %v73 = vld [vmem:[%s1] sm:$0xff]
  %v74 = vld [vmem:[%s1 + $0x8] sm:$0xff]
  %v75 = vld [vmem:[%s1 + $0x10] sm:$0xff]
  %v76 = vld [vmem:[%s1 + $0x18] sm:$0xff]
  %v77 = vld [vmem:[%s1 + $0x20] sm:$0xff]
  %v78 = vld [vmem:[%s1 + $0x28] sm:$0xff]
  %v79 = vld [vmem:[%s1 + $0x30] sm:$0xff]
  %v80 = vld [vmem:[%s1 + $0x38] sm:$0xff]
  %v81 = vld [vmem:[%s1 + $0x40] sm:$0xff]
  %v82 = vld [vmem:[%s1 + $0x48] sm:$0xff]
  %v83 = vld [vmem:[%s1 + $0x50] sm:$0xff]
  %v84 = vld [vmem:[%s1 + $0x58] sm:$0xff]
  %v85 = vld [vmem:[%s1 + $0x60] sm:$0xff]
  %v86 = vld [vmem:[%s1 + $0x68] sm:$0xff]
  %v87 = vld [vmem:[%s1 + $0x70] sm:$0xff]
  %v88 = vld [vmem:[%s1 + $0x78] sm:$0xff]
  %v89 = vld [vmem:[%s1 + $0x80] sm:$0xff]
  %v90 = vld [vmem:[%s1 + $0x88] sm:$0xff]
  %v91 = vld [vmem:[%s1 + $0x90] sm:$0xff]
  %v92 = vld [vmem:[%s1 + $0x98] sm:$0xff]
  %v93 = vld [vmem:[%s1 + $0xa0] sm:$0xff]
  %v94 = vld [vmem:[%s1 + $0xa8] sm:$0xff]
  %v95 = vld [vmem:[%s1 + $0xb0] sm:$0xff]
  %v96 = vld [vmem:[%s1 + $0xb8] sm:$0xff]
  %v97 = vld [vmem:[%s1 + $0xc0] sm:$0xff]
  %v98 = vld [vmem:[%s1 + $0xc8] sm:$0xff]
  %v99 = vld [vmem:[%s1 + $0xd0] sm:$0xff]
  %v100 = vld [vmem:[%s1 + $0xd8] sm:$0xff]
  %v101 = vld [vmem:[%s1 + $0xe0] sm:$0xff]
  %v102 = vld [vmem:[%s1 + $0xe8] sm:$0xff]
  %v103 = vld [vmem:[%s1 + $0xf0] sm:$0xff]
  %v104 = vld [vmem:[%s1 + $0xf8] sm:$0xff]
  %v105 = vld [vmem:[%s1 + $0x100] sm:$0xff]
  %v106 = vld [vmem:[%s1 + $0x108] sm:$0xff]
  %v107 = vld [vmem:[%s1 + $0x110] sm:$0xff]
  %v108 = vld [vmem:[%s1 + $0x118] sm:$0xff]
  %v109 = vld [vmem:[%s1 + $0x120] sm:$0xff]
  %v110 = vld [vmem:[%s1 + $0x128] sm:$0xff]
  %v111 = vld [vmem:[%s1 + $0x130] sm:$0xff]
  %v112 = vld [vmem:[%s1 + $0x138] sm:$0xff]
  %v113 = vld [vmem:[%s1 + $0x140] sm:$0xff]
  %v114 = vld [vmem:[%s1 + $0x148] sm:$0xff]
  %v115 = vld [vmem:[%s1 + $0x150] sm:$0xff]
  %v116 = vld [vmem:[%s1 + $0x158] sm:$0xff]
  %v117 = vld [vmem:[%s1 + $0x160] sm:$0xff]
  %v118 = vld [vmem:[%s1 + $0x168] sm:$0xff]
  %v119 = vld [vmem:[%s1 + $0x170] sm:$0xff]
  %v120 = vld [vmem:[%s1 + $0x178] sm:$0xff]
  %v121 = vld [vmem:[%s1 + $0x180] sm:$0xff]
  %v122 = vld [vmem:[%s1 + $0x188] sm:$0xff]
  %v123 = vld [vmem:[%s1 + $0x190] sm:$0xff]
  %v124 = vld [vmem:[%s1 + $0x198] sm:$0xff]
  %v125 = vld [vmem:[%s1 + $0x1a0] sm:$0xff]
  %v126 = vld [vmem:[%s1 + $0x1a8] sm:$0xff]
  %v127 = vld [vmem:[%s1 + $0x1b0] sm:$0xff]
  %v128 = vld [vmem:[%s1 + $0x1b8] sm:$0xff]
  %v129 = vld [vmem:[%s1 + $0x1c0] sm:$0xff]
  %v130 = vld [vmem:[%s1 + $0x1c8] sm:$0xff]
  %v131 = vld [vmem:[%s1 + $0x1d0] sm:$0xff]
  %v132 = vld [vmem:[%s1 + $0x1d8] sm:$0xff]
  %v133 = vld [vmem:[%s1 + $0x1e0] sm:$0xff]
  %v134 = vld [vmem:[%s1 + $0x1e8] sm:$0xff]
  %v135 = vld [vmem:[%s1 + $0x1f0] sm:$0xff]
  %v136 = vld [vmem:[%s1 + $0x1f8] sm:$0xff]
  %v137 = vld [vmem:[%s1 + $0x200] sm:$0xff]
  %v138 = vld [vmem:[%s1 + $0x208] sm:$0xff]
  %v139 = vld [vmem:[%s1 + $0x210] sm:$0xff]
  %v140 = vld [vmem:[%s1 + $0x218] sm:$0xff]
  %v141 = vld [vmem:[%s1 + $0x220] sm:$0xff]
  %v142 = vld [vmem:[%s1 + $0x228] sm:$0xff]
  %v143 = vld [vmem:[%s1 + $0x230] sm:$0xff]
  %v144 = vld [vmem:[%s1 + $0x238] sm:$0xff]
  %v145 = vld [vmem:[%s1 + $0x240] sm:$0xff]
  %v146 = vld [vmem:[%s1 + $0x248] sm:$0xff]
  %v147 = vld [vmem:[%s1 + $0x250] sm:$0xff]
  %v148 = vld [vmem:[%s1 + $0x258] sm:$0xff]
  %v149 = vld [vmem:[%s1 + $0x260] sm:$0xff]
  %v150 = vld [vmem:[%s1 + $0x268] sm:$0xff]
  %v151 = vld [vmem:[%s1 + $0x270] sm:$0xff]
  %v152 = vld [vmem:[%s1 + $0x278] sm:$0xff]
  %v153 = vld [vmem:[%s1 + $0x280] sm:$0xff]
  %v154 = vld [vmem:[%s1 + $0x288] sm:$0xff]
  %v155 = vld [vmem:[%s1 + $0x290] sm:$0xff]
  %v156 = vld [vmem:[%s1 + $0x298] sm:$0xff]
  %v157 = vld [vmem:[%s1 + $0x2a0] sm:$0xff]
  %v158 = vld [vmem:[%s1 + $0x2a8] sm:$0xff]
  %v159 = vld [vmem:[%s1 + $0x2b0] sm:$0xff]
  %v160 = vld [vmem:[%s1 + $0x2b8] sm:$0xff]
  %v161 = vld [vmem:[%s1 + $0x2c0] sm:$0xff]
  %v162 = vld [vmem:[%s1 + $0x2c8] sm:$0xff]
  %v163 = vld [vmem:[%s1 + $0x2d0] sm:$0xff]
  %v164 = vld [vmem:[%s1 + $0x2d8] sm:$0xff]
  %v165 = vld [vmem:[%s1 + $0x2e0] sm:$0xff]
  %v166 = vld [vmem:[%s1 + $0x2e8] sm:$0xff]
  %v167 = vld [vmem:[%s1 + $0x2f0] sm:$0xff]
  %v168 = vld [vmem:[%s1 + $0x2f8] sm:$0xff]
  %v169 = vld [vmem:[%s1 + $0x300] sm:$0xff]
  %v170 = vld [vmem:[%s1 + $0x308] sm:$0xff]
  %v171 = vld [vmem:[%s1 + $0x310] sm:$0xff]
  %v172 = vld [vmem:[%s1 + $0x318] sm:$0xff]
  %v173 = vld [vmem:[%s1 + $0x320] sm:$0xff]
  %v174 = vld [vmem:[%s1 + $0x328] sm:$0xff]
  %v175 = vld [vmem:[%s1 + $0x330] sm:$0xff]
  %v176 = vld [vmem:[%s1 + $0x338] sm:$0xff]
  %v177 = vld [vmem:[%s1 + $0x340] sm:$0xff]
  %v178 = vld [vmem:[%s1 + $0x348] sm:$0xff]
  %v179 = vld [vmem:[%s1 + $0x350] sm:$0xff]
  %v180 = vld [vmem:[%s1 + $0x358] sm:$0xff]
  %v181 = vld [vmem:[%s1 + $0x360] sm:$0xff]
  %v182 = vld [vmem:[%s1 + $0x368] sm:$0xff]
  %v183 = vld [vmem:[%s1 + $0x370] sm:$0xff]
  %v184 = vld [vmem:[%s1 + $0x378] sm:$0xff]
  %185 = vmatpush.msra.mxu0 %v88
  %186 = vmatpush.msra.mxu0 %v87
  %187 = vmatpush.msra.mxu0 %v86
  %188 = vmatpush.msra.mxu0 %v85
  %189 = vmatpush.msra.mxu0 %v84
  %190 = vmatpush.msra.mxu0 %v83
  %191 = vmatpush.msra.mxu0 %v82
  %192 = vmatpush.msra.mxu0 %v81
  %193 = vmatpush.msra.mxu0 %v80
  %194 = vmatpush.msra.mxu0 %v79
  %195 = vmatpush.msra.mxu0 %v78
  %196 = vmatpush.msra.mxu0 %v77
  %197 = vmatpush.msra.mxu0 %v76
  %198 = vmatpush.msra.mxu0 %v75
  %199 = vmatpush.msra.mxu0 %v74
  %200 = vmatpush.msra.mxu0 %v73
  %201 = vmatmul.f32.gmra.mxu0 %v17
  %v202 = vpop.f32.mrf.mxu0
  %v203 = vadd.f32 0.0, %v202
  %204 = vmatmul.f32.gmra.mxu0 %v24
  %v205 = vpop.f32.mrf.mxu0
  %v206 = vadd.f32 0.0, %v205
  %207 = vmatmul.f32.gmra.mxu0 %v31
  %v208 = vpop.f32.mrf.mxu0
  %v209 = vadd.f32 0.0, %v208
  %210 = vmatmul.f32.gmra.mxu0 %v38
  %v211 = vpop.f32.mrf.mxu0
  %v212 = vadd.f32 0.0, %v211
  %213 = vmatmul.f32.gmra.mxu0 %v45
  %v214 = vpop.f32.mrf.mxu0
  %v215 = vadd.f32 0.0, %v214
  %216 = vmatmul.f32.gmra.mxu0 %v52
  %v217 = vpop.f32.mrf.mxu0
  %v218 = vadd.f32 0.0, %v217
  %219 = vmatmul.f32.gmra.mxu0 %v59
  %v220 = vpop.f32.mrf.mxu0
  %v221 = vadd.f32 0.0, %v220
  %222 = vmatmul.f32.gmra.mxu0 %v66
  %v223 = vpop.f32.mrf.mxu0
  %v224 = vadd.f32 0.0, %v223
  %225 = vdwg.mxu0
  %226 = vmatpush.msra.mxu0 %v104
  %227 = vmatpush.msra.mxu0 %v103
  %228 = vmatpush.msra.mxu0 %v102
  %229 = vmatpush.msra.mxu0 %v101
  %230 = vmatpush.msra.mxu0 %v100
  %231 = vmatpush.msra.mxu0 %v99
  %232 = vmatpush.msra.mxu0 %v98
  %233 = vmatpush.msra.mxu0 %v97
  %234 = vmatpush.msra.mxu0 %v96
  %235 = vmatpush.msra.mxu0 %v95
  %236 = vmatpush.msra.mxu0 %v94
  %237 = vmatpush.msra.mxu0 %v93
  %238 = vmatpush.msra.mxu0 %v92
  %239 = vmatpush.msra.mxu0 %v91
  %240 = vmatpush.msra.mxu0 %v90
  %241 = vmatpush.msra.mxu0 %v89
  %242 = vmatmul.f32.gmra.mxu0 %v18
  %v243 = vpop.f32.mrf.mxu0
  %v244 = vadd.f32 %v203, %v243
  %245 = vmatmul.f32.gmra.mxu0 %v25
  %v246 = vpop.f32.mrf.mxu0
  %v247 = vadd.f32 %v206, %v246
  %248 = vmatmul.f32.gmra.mxu0 %v32
  %v249 = vpop.f32.mrf.mxu0
  %v250 = vadd.f32 %v209, %v249
  %251 = vmatmul.f32.gmra.mxu0 %v39
  %v252 = vpop.f32.mrf.mxu0
  %v253 = vadd.f32 %v212, %v252
  %254 = vmatmul.f32.gmra.mxu0 %v46
  %v255 = vpop.f32.mrf.mxu0
  %v256 = vadd.f32 %v215, %v255
  %257 = vmatmul.f32.gmra.mxu0 %v53
  %v258 = vpop.f32.mrf.mxu0
  %v259 = vadd.f32 %v218, %v258
  %260 = vmatmul.f32.gmra.mxu0 %v60
  %v261 = vpop.f32.mrf.mxu0
  %v262 = vadd.f32 %v221, %v261
  %263 = vmatmul.f32.gmra.mxu0 %v67
  %v264 = vpop.f32.mrf.mxu0
  %v265 = vadd.f32 %v224, %v264
  %266 = vdwg.mxu0
  %267 = vmatpush.msra.mxu0 %v120
  %268 = vmatpush.msra.mxu0 %v119
  %269 = vmatpush.msra.mxu0 %v118
  %270 = vmatpush.msra.mxu0 %v117
  %271 = vmatpush.msra.mxu0 %v116
  %272 = vmatpush.msra.mxu0 %v115
  %273 = vmatpush.msra.mxu0 %v114
  %274 = vmatpush.msra.mxu0 %v113
  %275 = vmatpush.msra.mxu0 %v112
  %276 = vmatpush.msra.mxu0 %v111
  %277 = vmatpush.msra.mxu0 %v110
  %278 = vmatpush.msra.mxu0 %v109
  %279 = vmatpush.msra.mxu0 %v108
  %280 = vmatpush.msra.mxu0 %v107
  %281 = vmatpush.msra.mxu0 %v106
  %282 = vmatpush.msra.mxu0 %v105
  %283 = vmatmul.f32.gmra.mxu0 %v19
  %v284 = vpop.f32.mrf.mxu0
  %v285 = vadd.f32 %v244, %v284
  %286 = vmatmul.f32.gmra.mxu0 %v26
  %v287 = vpop.f32.mrf.mxu0
  %v288 = vadd.f32 %v247, %v287
  %289 = vmatmul.f32.gmra.mxu0 %v33
  %v290 = vpop.f32.mrf.mxu0
  %v291 = vadd.f32 %v250, %v290
  %292 = vmatmul.f32.gmra.mxu0 %v40
  %v293 = vpop.f32.mrf.mxu0
  %v294 = vadd.f32 %v253, %v293
  %295 = vmatmul.f32.gmra.mxu0 %v47
  %v296 = vpop.f32.mrf.mxu0
  %v297 = vadd.f32 %v256, %v296
  %298 = vmatmul.f32.gmra.mxu0 %v54
  %v299 = vpop.f32.mrf.mxu0
  %v300 = vadd.f32 %v259, %v299
  %301 = vmatmul.f32.gmra.mxu0 %v61
  %v302 = vpop.f32.mrf.mxu0
  %v303 = vadd.f32 %v262, %v302
  %304 = vmatmul.f32.gmra.mxu0 %v68
  %v305 = vpop.f32.mrf.mxu0
  %v306 = vadd.f32 %v265, %v305
  %307 = vdwg.mxu0
  %308 = vmatpush.msra.mxu0 %v136
  %309 = vmatpush.msra.mxu0 %v135
  %310 = vmatpush.msra.mxu0 %v134
  %311 = vmatpush.msra.mxu0 %v133
  %312 = vmatpush.msra.mxu0 %v132
  %313 = vmatpush.msra.mxu0 %v131
  %314 = vmatpush.msra.mxu0 %v130
  %315 = vmatpush.msra.mxu0 %v129
  %316 = vmatpush.msra.mxu0 %v128
  %317 = vmatpush.msra.mxu0 %v127
  %318 = vmatpush.msra.mxu0 %v126
  %319 = vmatpush.msra.mxu0 %v125
  %320 = vmatpush.msra.mxu0 %v124
  %321 = vmatpush.msra.mxu0 %v123
  %322 = vmatpush.msra.mxu0 %v122
  %323 = vmatpush.msra.mxu0 %v121
  %324 = vmatmul.f32.gmra.mxu0 %v20
  %v325 = vpop.f32.mrf.mxu0
  %v326 = vadd.f32 %v285, %v325
  %327 = vmatmul.f32.gmra.mxu0 %v27
  %v328 = vpop.f32.mrf.mxu0
  %v329 = vadd.f32 %v288, %v328
  %330 = vmatmul.f32.gmra.mxu0 %v34
  %v331 = vpop.f32.mrf.mxu0
  %v332 = vadd.f32 %v291, %v331
  %333 = vmatmul.f32.gmra.mxu0 %v41
  %v334 = vpop.f32.mrf.mxu0
  %v335 = vadd.f32 %v294, %v334
  %336 = vmatmul.f32.gmra.mxu0 %v48
  %v337 = vpop.f32.mrf.mxu0
  %v338 = vadd.f32 %v297, %v337
  %339 = vmatmul.f32.gmra.mxu0 %v55
  %v340 = vpop.f32.mrf.mxu0
  %v341 = vadd.f32 %v300, %v340
  %342 = vmatmul.f32.gmra.mxu0 %v62
  %v343 = vpop.f32.mrf.mxu0
  %v344 = vadd.f32 %v303, %v343
  %345 = vmatmul.f32.gmra.mxu0 %v69
  %v346 = vpop.f32.mrf.mxu0
  %v347 = vadd.f32 %v306, %v346
  %348 = vdwg.mxu0
  %349 = vmatpush.msra.mxu0 %v152
  %350 = vmatpush.msra.mxu0 %v151
  %351 = vmatpush.msra.mxu0 %v150
  %352 = vmatpush.msra.mxu0 %v149
  %353 = vmatpush.msra.mxu0 %v148
  %354 = vmatpush.msra.mxu0 %v147
  %355 = vmatpush.msra.mxu0 %v146
  %356 = vmatpush.msra.mxu0 %v145
  %357 = vmatpush.msra.mxu0 %v144
  %358 = vmatpush.msra.mxu0 %v143
  %359 = vmatpush.msra.mxu0 %v142
  %360 = vmatpush.msra.mxu0 %v141
  %361 = vmatpush.msra.mxu0 %v140
  %362 = vmatpush.msra.mxu0 %v139
  %363 = vmatpush.msra.mxu0 %v138
  %364 = vmatpush.msra.mxu0 %v137
  %365 = vmatmul.f32.gmra.mxu0 %v21
  %v366 = vpop.f32.mrf.mxu0
  %v367 = vadd.f32 %v326, %v366
  %368 = vmatmul.f32.gmra.mxu0 %v28
  %v369 = vpop.f32.mrf.mxu0
  %v370 = vadd.f32 %v329, %v369
  %371 = vmatmul.f32.gmra.mxu0 %v35
  %v372 = vpop.f32.mrf.mxu0
  %v373 = vadd.f32 %v332, %v372
  %374 = vmatmul.f32.gmra.mxu0 %v42
  %v375 = vpop.f32.mrf.mxu0
  %v376 = vadd.f32 %v335, %v375
  %377 = vmatmul.f32.gmra.mxu0 %v49
  %v378 = vpop.f32.mrf.mxu0
  %v379 = vadd.f32 %v338, %v378
  %380 = vmatmul.f32.gmra.mxu0 %v56
  %v381 = vpop.f32.mrf.mxu0
  %v382 = vadd.f32 %v341, %v381
  %383 = vmatmul.f32.gmra.mxu0 %v63
  %v384 = vpop.f32.mrf.mxu0
  %v385 = vadd.f32 %v344, %v384
  %386 = vmatmul.f32.gmra.mxu0 %v70
  %v387 = vpop.f32.mrf.mxu0
  %v388 = vadd.f32 %v347, %v387
  %389 = vdwg.mxu0
  %390 = vmatpush.msra.mxu0 %v168
  %391 = vmatpush.msra.mxu0 %v167
  %392 = vmatpush.msra.mxu0 %v166
  %393 = vmatpush.msra.mxu0 %v165
  %394 = vmatpush.msra.mxu0 %v164
  %395 = vmatpush.msra.mxu0 %v163
  %396 = vmatpush.msra.mxu0 %v162
  %397 = vmatpush.msra.mxu0 %v161
  %398 = vmatpush.msra.mxu0 %v160
  %399 = vmatpush.msra.mxu0 %v159
  %400 = vmatpush.msra.mxu0 %v158
  %401 = vmatpush.msra.mxu0 %v157
  %402 = vmatpush.msra.mxu0 %v156
  %403 = vmatpush.msra.mxu0 %v155
  %404 = vmatpush.msra.mxu0 %v154
  %405 = vmatpush.msra.mxu0 %v153
  %406 = vmatmul.f32.gmra.mxu0 %v22
  %v407 = vpop.f32.mrf.mxu0
  %v408 = vadd.f32 %v367, %v407
  %409 = vmatmul.f32.gmra.mxu0 %v29
  %v410 = vpop.f32.mrf.mxu0
  %v411 = vadd.f32 %v370, %v410
  %412 = vmatmul.f32.gmra.mxu0 %v36
  %v413 = vpop.f32.mrf.mxu0
  %v414 = vadd.f32 %v373, %v413
  %415 = vmatmul.f32.gmra.mxu0 %v43
  %v416 = vpop.f32.mrf.mxu0
  %v417 = vadd.f32 %v376, %v416
  %418 = vmatmul.f32.gmra.mxu0 %v50
  %v419 = vpop.f32.mrf.mxu0
  %v420 = vadd.f32 %v379, %v419
  %421 = vmatmul.f32.gmra.mxu0 %v57
  %v422 = vpop.f32.mrf.mxu0
  %v423 = vadd.f32 %v382, %v422
  %424 = vmatmul.f32.gmra.mxu0 %v64
  %v425 = vpop.f32.mrf.mxu0
  %v426 = vadd.f32 %v385, %v425
  %427 = vmatmul.f32.gmra.mxu0 %v71
  %v428 = vpop.f32.mrf.mxu0
  %v429 = vadd.f32 %v388, %v428
  %430 = vdwg.mxu0
  %431 = vmatpush.msra.mxu0 %v184
  %432 = vmatpush.msra.mxu0 %v183
  %433 = vmatpush.msra.mxu0 %v182
  %434 = vmatpush.msra.mxu0 %v181
  %435 = vmatpush.msra.mxu0 %v180
  %436 = vmatpush.msra.mxu0 %v179
  %437 = vmatpush.msra.mxu0 %v178
  %438 = vmatpush.msra.mxu0 %v177
  %439 = vmatpush.msra.mxu0 %v176
  %440 = vmatpush.msra.mxu0 %v175
  %441 = vmatpush.msra.mxu0 %v174
  %442 = vmatpush.msra.mxu0 %v173
  %443 = vmatpush.msra.mxu0 %v172
  %444 = vmatpush.msra.mxu0 %v171
  %445 = vmatpush.msra.mxu0 %v170
  %446 = vmatpush.msra.mxu0 %v169
  %447 = vmatmul.f32.gmra.mxu0 %v23
  %v448 = vpop.f32.mrf.mxu0
  %v449 = vadd.f32 %v408, %v448
  %450 = vmatmul.f32.gmra.mxu0 %v30
  %v451 = vpop.f32.mrf.mxu0
  %v452 = vadd.f32 %v411, %v451
  %453 = vmatmul.f32.gmra.mxu0 %v37
  %v454 = vpop.f32.mrf.mxu0
  %v455 = vadd.f32 %v414, %v454
  %456 = vmatmul.f32.gmra.mxu0 %v44
  %v457 = vpop.f32.mrf.mxu0
  %v458 = vadd.f32 %v417, %v457
  %459 = vmatmul.f32.gmra.mxu0 %v51
  %v460 = vpop.f32.mrf.mxu0
  %v461 = vadd.f32 %v420, %v460
  %462 = vmatmul.f32.gmra.mxu0 %v58
  %v463 = vpop.f32.mrf.mxu0
  %v464 = vadd.f32 %v423, %v463
  %465 = vmatmul.f32.gmra.mxu0 %v65
  %v466 = vpop.f32.mrf.mxu0
  %v467 = vadd.f32 %v426, %v466
  %468 = vmatmul.f32.gmra.mxu0 %v72
  %v469 = vpop.f32.mrf.mxu0
  %v470 = vadd.f32 %v429, %v469
  %471 = vdwg.mxu0
  %v472 = vmax.f32 %v449, 0.0
  %v473 = vmax.f32 %v452, 0.0
  %v474 = vmax.f32 %v455, 0.0
  %v475 = vmax.f32 %v458, 0.0
  %v476 = vmax.f32 %v461, 0.0
  %v477 = vmax.f32 %v464, 0.0
  %v478 = vmax.f32 %v467, 0.0
  %v479 = vmax.f32 %v470, 0.0
  %v480 = vld [vmem:[%s2] sm:$0xff]
  %v481 = vld [vmem:[%s2 + $0x8] sm:$0xff]
  %v482 = vld [vmem:[%s2 + $0x10] sm:$0xff]
  %v483 = vld [vmem:[%s2 + $0x18] sm:$0xff]
  %v484 = vld [vmem:[%s2 + $0x20] sm:$0xff]
  %v485 = vld [vmem:[%s2 + $0x28] sm:$0xff]
  %v486 = vld [vmem:[%s2 + $0x30] sm:$0xff]
  %v487 = vld [vmem:[%s2 + $0x38] sm:$0xff]
  %v488 = vld [vmem:[%s2 + $0x40] sm:$0xff]
  %v489 = vld [vmem:[%s2 + $0x48] sm:$0xff]
  %v490 = vld [vmem:[%s2 + $0x50] sm:$0xff]
  %v491 = vld [vmem:[%s2 + $0x58] sm:$0xff]
  %v492 = vld [vmem:[%s2 + $0x60] sm:$0xff]
  %v493 = vld [vmem:[%s2 + $0x68] sm:$0xff]
  %v494 = vld [vmem:[%s2 + $0x70] sm:$0xff]
  %v495 = vld [vmem:[%s2 + $0x78] sm:$0xff]
  %496 = vmatpush.msra.mxu0 %v495
  %497 = vmatpush.msra.mxu0 %v494
  %498 = vmatpush.msra.mxu0 %v493
  %499 = vmatpush.msra.mxu0 %v492
  %500 = vmatpush.msra.mxu0 %v491
  %501 = vmatpush.msra.mxu0 %v490
  %502 = vmatpush.msra.mxu0 %v489
  %503 = vmatpush.msra.mxu0 %v488
  %504 = vmatpush.msra.mxu0 %v487
  %505 = vmatpush.msra.mxu0 %v486
  %506 = vmatpush.msra.mxu0 %v485
  %507 = vmatpush.msra.mxu0 %v484
  %508 = vmatpush.msra.mxu0 %v483
  %509 = vmatpush.msra.mxu0 %v482
  %510 = vmatpush.msra.mxu0 %v481
  %511 = vmatpush.msra.mxu0 %v480
  %512 = vmatmul.f32.gmra.mxu0 %v472
  %v513 = vpop.f32.mrf.mxu0
  %v514 = vadd.f32 0.0, %v513
  %515 = vmatmul.f32.gmra.mxu0 %v473
  %v516 = vpop.f32.mrf.mxu0
  %v517 = vadd.f32 0.0, %v516
  %518 = vmatmul.f32.gmra.mxu0 %v474
  %v519 = vpop.f32.mrf.mxu0
  %v520 = vadd.f32 0.0, %v519
  %521 = vmatmul.f32.gmra.mxu0 %v475
  %v522 = vpop.f32.mrf.mxu0
  %v523 = vadd.f32 0.0, %v522
  %524 = vmatmul.f32.gmra.mxu0 %v476
  %v525 = vpop.f32.mrf.mxu0
  %v526 = vadd.f32 0.0, %v525
  %527 = vmatmul.f32.gmra.mxu0 %v477
  %v528 = vpop.f32.mrf.mxu0
  %v529 = vadd.f32 0.0, %v528
  %530 = vmatmul.f32.gmra.mxu0 %v478
  %v531 = vpop.f32.mrf.mxu0
  %v532 = vadd.f32 0.0, %v531
  %533 = vmatmul.f32.gmra.mxu0 %v479
  %v534 = vpop.f32.mrf.mxu0
  %v535 = vadd.f32 0.0, %v534
  %536 = vdwg.mxu0
  %v537 = vmax.f32 %v514, 0.0
  %v538 = vmax.f32 %v517, 0.0
  %v539 = vmax.f32 %v520, 0.0
  %v540 = vmax.f32 %v523, 0.0
  %v541 = vmax.f32 %v526, 0.0
  %v542 = vmax.f32 %v529, 0.0
  %v543 = vmax.f32 %v532, 0.0
  %v544 = vmax.f32 %v535, 0.0
  %v545 = vld [vmem:[%s3] sm:$0xff]
  %v546 = vld [vmem:[%s3 + $0x8] sm:$0xff]
  %v547 = vld [vmem:[%s3 + $0x10] sm:$0xff]
  %v548 = vld [vmem:[%s3 + $0x18] sm:$0xff]
  %v549 = vld [vmem:[%s3 + $0x20] sm:$0xff]
  %v550 = vld [vmem:[%s3 + $0x28] sm:$0xff]
  %v551 = vld [vmem:[%s3 + $0x30] sm:$0xff]
  %v552 = vld [vmem:[%s3 + $0x38] sm:$0xff]
  %v553 = vld [vmem:[%s3 + $0x40] sm:$0xff]
  %v554 = vld [vmem:[%s3 + $0x48] sm:$0xff]
  %v555 = vld [vmem:[%s3 + $0x50] sm:$0xff]
  %v556 = vld [vmem:[%s3 + $0x58] sm:$0xff]
  %v557 = vld [vmem:[%s3 + $0x60] sm:$0xff]
  %v558 = vld [vmem:[%s3 + $0x68] sm:$0xff]
  %v559 = vld [vmem:[%s3 + $0x70] sm:$0xff]
  %v560 = vld [vmem:[%s3 + $0x78] sm:$0xff]
  %561 = vmatpush.msra.mxu0 %v560
  %562 = vmatpush.msra.mxu0 %v559
  %563 = vmatpush.msra.mxu0 %v558
  %564 = vmatpush.msra.mxu0 %v557
  %565 = vmatpush.msra.mxu0 %v556
  %566 = vmatpush.msra.mxu0 %v555
  %567 = vmatpush.msra.mxu0 %v554
  %568 = vmatpush.msra.mxu0 %v553
  %569 = vmatpush.msra.mxu0 %v552
  %570 = vmatpush.msra.mxu0 %v551
  %571 = vmatpush.msra.mxu0 %v550
  %572 = vmatpush.msra.mxu0 %v549
  %573 = vmatpush.msra.mxu0 %v548
  %574 = vmatpush.msra.mxu0 %v547
  %575 = vmatpush.msra.mxu0 %v546
  %576 = vmatpush.msra.mxu0 %v545
  %577 = vmatmul.f32.gmra.mxu0 %v537
  %v578 = vpop.f32.mrf.mxu0
  %v579 = vadd.f32 0.0, %v578
  %580 = vmatmul.f32.gmra.mxu0 %v538
  %v581 = vpop.f32.mrf.mxu0
  %v582 = vadd.f32 0.0, %v581
  %583 = vmatmul.f32.gmra.mxu0 %v539
  %v584 = vpop.f32.mrf.mxu0
  %v585 = vadd.f32 0.0, %v584
  %586 = vmatmul.f32.gmra.mxu0 %v540
  %v587 = vpop.f32.mrf.mxu0
  %v588 = vadd.f32 0.0, %v587
  %589 = vmatmul.f32.gmra.mxu0 %v541
  %v590 = vpop.f32.mrf.mxu0
  %v591 = vadd.f32 0.0, %v590
  %592 = vmatmul.f32.gmra.mxu0 %v542
  %v593 = vpop.f32.mrf.mxu0
  %v594 = vadd.f32 0.0, %v593
  %595 = vmatmul.f32.gmra.mxu0 %v543
  %v596 = vpop.f32.mrf.mxu0
  %v597 = vadd.f32 0.0, %v596
  %598 = vmatmul.f32.gmra.mxu0 %v544
  %v599 = vpop.f32.mrf.mxu0
  %v600 = vadd.f32 0.0, %v599
  %601 = vdwg.mxu0
  %602 = vst [vmem:[%s4] sm:$0xff] %v579
  %603 = vst [vmem:[%s4 + $0x8] sm:$0xff] %v582
  %604 = vst [vmem:[%s4 + $0x10] sm:$0xff] %v585
  %605 = vst [vmem:[%s4 + $0x18] sm:$0xff] %v588
  %606 = vst [vmem:[%s4 + $0x20] sm:$0xff] %v591
  %607 = vst [vmem:[%s4 + $0x28] sm:$0xff] %v594
  %608 = vst [vmem:[%s4 + $0x30] sm:$0xff] %v597
  %609 = vst [vmem:[%s4 + $0x38] sm:$0xff] %v600
  // Predicated region
  $region18: #{mlp_forward.1} parent=0 // pred_check
    _
  $region19: #{mlp_forward.1} parent=0 // pred_check_branch
    %611 = sbr.rel (0) target = $region21
  $region20: #{mlp_forward.1} parent=0 // pred_region
    _
  $region21: #{mlp_forward.1} parent=0 // pred_fallthru
    _
  // Predicated region
  $region22: #{mlp_forward.1} parent=0 // pred_check
    _
  $region23: #{mlp_forward.1} parent=0 // pred_check_branch
    %613 = sbr.rel (0) target = $region25
  $region24: #{mlp_forward.1} parent=0 // pred_region
    _
  $region25: #{mlp_forward.1} parent=0 // pred_fallthru
    _

</llo_original>
